<compile_context>
chip_gen: v7x
topology: tpu7x:2x2x1
jax: 0.10.0
libtpu: 0.0.40
codegen_flags: <defaults>
</compile_context>

<pallas_src>
import functools

import numpy as np
import jax
import jax.numpy as jnp
from jax.experimental import pallas as pl
from jax.experimental.pallas import tpu as pltpu


def _round_up(x, m):
    return ((x + m - 1) // m) * m


# ---------------------------------------------------------------------------
# Fused Pallas kernel:
#   per row-tile i (once, at class step j == 0):
#       geo_feat = geo_raw @ geo_w + geo_b
#       h        = tanh(loc_emb @ enc_w_loc + geo_feat @ enc_w_geo + enc_b)
#   per (i, j):
#       logits_ij = h @ head_w_h[:, j] + user_emb @ head_w_u[:, j] + head_b[j]
#       online (m, l) running log-sum-exp over the class tiles
#   at the last class step: lse_i = m + log(l)
# log-softmax (logits - lse) is a cheap broadcast-subtract outside the kernel.
# ---------------------------------------------------------------------------

def _fused_poi_kernel(loc_ref, geo_ref, usr_ref,
                      geo_w_ref, geo_b_ref,
                      enc_wl_ref, enc_wg_ref, enc_b_ref,
                      head_wh_ref, head_wu_ref, head_b_ref,
                      logits_ref, lse_ref,
                      h_sc, m_sc, l_sc):
    j = pl.program_id(1)

    @pl.when(j == 0)
    def _():
        # geohash dense (kept entirely in VMEM — never stored to HBM)
        geo_feat = jnp.dot(geo_ref[...], geo_w_ref[...],
                           preferred_element_type=jnp.float32) + geo_b_ref[...]
        # spatial-encoder stand-in: split-weight linear + tanh
        h = jnp.dot(loc_ref[...], enc_wl_ref[...],
                    preferred_element_type=jnp.float32)
        h = h + jnp.dot(geo_feat, enc_wg_ref[...],
                        preferred_element_type=jnp.float32)
        h_sc[...] = jnp.tanh(h + enc_b_ref[...])
        m_sc[...] = jnp.full_like(m_sc, -1e30)
        l_sc[...] = jnp.zeros_like(l_sc)

    # POI head tile: bf16 MXU inputs, f32 accumulation, f32 epilogue.
    logits = jnp.dot(h_sc[...].astype(jnp.bfloat16), head_wh_ref[...],
                     preferred_element_type=jnp.float32)
    logits = logits + jnp.dot(usr_ref[...].astype(jnp.bfloat16), head_wu_ref[...],
                              preferred_element_type=jnp.float32)
    logits = logits + head_b_ref[...]
    logits_ref[...] = logits

    # online log-sum-exp over class tiles
    m_prev = m_sc[...]
    m_new = jnp.maximum(m_prev, jnp.max(logits, axis=-1, keepdims=True))
    l_sc[...] = l_sc[...] * jnp.exp(m_prev - m_new) + jnp.sum(
        jnp.exp(logits - m_new), axis=-1, keepdims=True)
    m_sc[...] = m_new

    @pl.when(j == pl.num_programs(1) - 1)
    def _():
        lse_ref[...] = m_sc[...] + jnp.log(l_sc[...])


def fused_poi_forward(loc_rows, geo_rows, user_rows, params):
    """loc_rows [N_pad, E_loc], geo_rows [N_pad, 12], user_rows [N_pad, U] -> (logits, lse)."""
    n_pad, e_loc = loc_rows.shape
    g_in = geo_rows.shape[1]
    u = user_rows.shape[1]
    gh = params["geo_w"].shape[1]
    hid = params["enc_w_loc"].shape[1]
    c_pad = params["head_w_h"].shape[1]

    tn = min(128, n_pad)
    tc = 512 if c_pad % 512 == 0 else (256 if c_pad % 256 == 0 else 128)
    tc = min(tc, c_pad)
    assert n_pad % tn == 0 and c_pad % tc == 0
    grid = (n_pad // tn, c_pad // tc)

    logits, lse = pl.pallas_call(
        _fused_poi_kernel,
        out_shape=(jax.ShapeDtypeStruct((n_pad, c_pad), jnp.float32),
                   jax.ShapeDtypeStruct((n_pad, 1), jnp.float32)),
        grid=grid,
        in_specs=[
            pl.BlockSpec((tn, e_loc), lambda i, j: (i, 0)),   # loc embedding rows
            pl.BlockSpec((tn, g_in), lambda i, j: (i, 0)),    # raw geohash rows
            pl.BlockSpec((tn, u), lambda i, j: (i, 0)),       # user embedding rows
            pl.BlockSpec((g_in, gh), lambda i, j: (0, 0)),    # geo_w
            pl.BlockSpec((1, gh), lambda i, j: (0, 0)),       # geo_b
            pl.BlockSpec((e_loc, hid), lambda i, j: (0, 0)),  # enc_w_loc
            pl.BlockSpec((gh, hid), lambda i, j: (0, 0)),     # enc_w_geo
            pl.BlockSpec((1, hid), lambda i, j: (0, 0)),      # enc_b
            pl.BlockSpec((hid, tc), lambda i, j: (0, j)),     # head_w_h (bf16)
            pl.BlockSpec((u, tc), lambda i, j: (0, j)),       # head_w_u (bf16)
            pl.BlockSpec((1, tc), lambda i, j: (0, j)),       # head_b (padded cols = -1e30)
        ],
        out_specs=(
            pl.BlockSpec((tn, tc), lambda i, j: (i, j)),      # raw logits (lane-dense)
            pl.BlockSpec((tn, 1), lambda i, j: (i, 0)),       # per-row log-sum-exp
        ),
        scratch_shapes=[
            pltpu.VMEM((tn, hid), jnp.float32),               # hidden state cache
            pltpu.VMEM((tn, 1), jnp.float32),                 # running max
            pltpu.VMEM((tn, 1), jnp.float32),                 # running sum
        ],
        compiler_params=pltpu.CompilerParams(
            dimension_semantics=("parallel", "arbitrary")),
    )(loc_rows, geo_rows, user_rows,
      params["geo_w"], params["geo_b"],
      params["enc_w_loc"], params["enc_w_geo"], params["enc_b"],
      params["head_w_h"], params["head_w_u"], params["head_b"])
    return logits, lse


# ---------------------------------------------------------------------------
# Parameter construction (deterministic, xavier-style; weights pre-split / padded)
# ---------------------------------------------------------------------------

def _xavier_uniform(key, shape):
    fan_in, fan_out = shape[0], shape[1]
    limit = (6.0 / (fan_in + fan_out)) ** 0.5
    return jax.random.uniform(key, shape, jnp.float32, -limit, limit)


def _xavier_normal(key, shape):
    fan_in, fan_out = shape[0], shape[1]
    std = (2.0 / (fan_in + fan_out)) ** 0.5
    return jax.random.normal(key, shape, jnp.float32) * std


def init_params(key, cfg):
    ks = jax.random.split(key, 6)
    e_loc = cfg["loc_emb_size"]
    gh = cfg["geohash_size"]
    hid = cfg["hidden_size"]
    u = cfg["user_emb_size"]
    c = cfg["loc_size"]

    loc_emb = _xavier_normal(ks[0], (cfg["loc_size"], e_loc))
    tim_emb = _xavier_normal(ks[1], (cfg["tim_size"], cfg["tim_emb_size"]))  # unused by POI path
    user_emb = _xavier_normal(ks[2], (cfg["user_size"], u))

    geo_w = _xavier_uniform(ks[3], (12, gh))
    geo_b = jnp.zeros((1, gh), jnp.float32)

    # stand-in spatial encoder: Linear(loc_emb ++ geohash -> hidden) + tanh, stored split
    enc_w = _xavier_uniform(ks[4], (e_loc + gh, hid))
    enc_b = jnp.zeros((1, hid), jnp.float32)

    # POI head: Linear(hidden ++ user_emb -> loc_size), stored split + class-padded, bf16
    head_w = _xavier_uniform(ks[5], (hid + u, c))
    head_b = jnp.zeros((1, c), jnp.float32)
    tc = 512 if c >= 512 else (256 if c >= 256 else 128)
    c_pad = _round_up(c, tc)
    pad = c_pad - c
    head_w_h = jnp.pad(head_w[:hid], ((0, 0), (0, pad))).astype(jnp.bfloat16)
    head_w_u = jnp.pad(head_w[hid:], ((0, 0), (0, pad))).astype(jnp.bfloat16)
    head_b_p = jnp.pad(head_b, ((0, 0), (0, pad)), constant_values=-1e30)

    return dict(
        loc_emb=loc_emb, tim_emb=tim_emb, user_emb=user_emb,
        geo_w=geo_w, geo_b=geo_b,
        enc_w_loc=enc_w[:e_loc], enc_w_geo=enc_w[e_loc:], enc_b=enc_b,
        head_w_h=head_w_h, head_w_u=head_w_u, head_b=head_b_p,
    )


# ---------------------------------------------------------------------------
# MobilityLLM forward (POI downstream)
# ---------------------------------------------------------------------------

@functools.partial(jax.jit, static_argnames=("loc_size",))
def _forward_core(params, loc, geohash_raw, user, y_location, row_b, row_t, *, loc_size):
    # vectorized ragged gather (replaces per-sequence python slicing + concat)
    loc_ids = loc[row_b, row_t]                                       # [N_pad]
    loc_rows = jnp.take(params["loc_emb"], loc_ids, axis=0)           # [N_pad, E_loc]
    geo_rows = geohash_raw[row_b, row_t].astype(jnp.float32)          # [N_pad, 12]
    user_rows = jnp.take(params["user_emb"], user[row_b], axis=0)     # [N_pad, U]
    # NOTE: emb_tim is computed-but-unused in the PyTorch POI path -> dropped (DCE).

    logits, lse = fused_poi_forward(loc_rows, geo_rows, user_rows, params)
    pred = logits - lse                                               # log-softmax (padded cols ~ -inf)

    n = y_location.shape[0]
    pred_valid = pred[:n, :loc_size]
    nll = -jnp.take_along_axis(pred_valid, y_location[:, None], axis=1)[:, 0]
    s_loss_score = jnp.mean(nll)
    # topk(pred, k=loc_size) == full descending sort of the class indices
    top_k_pred = jnp.argsort(-pred_valid, axis=-1).astype(jnp.int32)
    return s_loss_score, top_k_pred


def mobility_llm_forward(params, batch, cfg):
    """Mirrors MobilityLLM.forward with downstream='POI', mode='test'.

    Returns (s_loss_score, top_k_pred, queue).
    """
    loc = batch["X_all_loc"]              # [B, L] int32
    user = batch["X_users"]               # [B]    int32
    geohash_raw = batch["X_all_geohash"]  # [B, L, 12] f32
    cur_len = batch["target_lengths"]     # python list of ints (static)
    all_len = batch["X_lengths"]          # python list of ints (static)
    y_location = batch["Y_location"]      # [sum(cur_len)] int32
    B = loc.shape[0]

    # Host-side (static-length) construction of the ragged-gather row indices:
    # row n comes from (batch row_b[n], time step row_t[n]) with
    # t in [all_len[b]-cur_len[b], all_len[b]).  Padded rows replicate index 0
    # and are sliced off after the kernel.
    row_b, row_t = [], []
    for i in range(B):
        left = all_len[i] - cur_len[i]
        row_b.extend([i] * cur_len[i])
        row_t.extend(range(left, all_len[i]))
    n = len(row_b)
    tn = min(128, _round_up(max(n, 1), 8))
    n_pad = _round_up(max(n, 1), tn)
    row_b += [0] * (n_pad - n)
    row_t += [0] * (n_pad - n)
    row_b = jnp.asarray(np.asarray(row_b, dtype=np.int32))
    row_t = jnp.asarray(np.asarray(row_t, dtype=np.int32))

    s_loss_score, top_k_pred = _forward_core(
        params, loc, geohash_raw, user, y_location, row_b, row_t,
        loc_size=cfg["loc_size"])
    queue = None
    return s_loss_score, top_k_pred, queue


# ---------------------------------------------------------------------------
# Demo
# ---------------------------------------------------------------------------

if __name__ == "__main__":
    cfg = dict(
        loc_size=128,
        loc_emb_size=32,
        tim_size=48,
        tim_emb_size=16,
        user_size=8,
        user_emb_size=16,
        geohash_size=16,
        hidden_size=32,
    )

    key = jax.random.PRNGKey(0)
    pkey, dkey = jax.random.split(key)
    params = init_params(pkey, cfg)

    B, L = 2, 8
    all_len = [8, 6]
    cur_len = [3, 2]
    n_targets = sum(cur_len)

    k1, k2, k3, k4, k5 = jax.random.split(dkey, 5)
    batch = dict(
        X_all_loc=jax.random.randint(k1, (B, L), 0, cfg["loc_size"], jnp.int32),
        X_all_tim=jax.random.randint(k2, (B, L), 0, cfg["tim_size"], jnp.int32),
        X_users=jax.random.randint(k3, (B,), 0, cfg["user_size"], jnp.int32),
        X_all_geohash=jax.random.normal(k4, (B, L, 12), jnp.float32),
        target_lengths=cur_len,
        X_lengths=all_len,
        Y_location=jax.random.randint(k5, (n_targets,), 0, cfg["loc_size"], jnp.int32),
    )

    loss, top_k_pred, queue = mobility_llm_forward(params, batch, cfg)
    jax.block_until_ready(loss)
    jax.block_until_ready(top_k_pred)

    assert top_k_pred.shape == (n_targets, cfg["loc_size"])
    assert bool(jnp.isfinite(loss))
    print("KERNEL_OK")
</pallas_src>

<mosaic_0001>
module attributes {stable_mosaic.version = 11 : i64} {
  func.func @_fused_poi_kernel(%arg0: i32, %arg1: i32, %arg2: memref<8x32xf32, #tpu.memory_space<vmem>>, %arg3: memref<8x12xf32, #tpu.memory_space<vmem>>, %arg4: memref<8x16xf32, #tpu.memory_space<vmem>>, %arg5: memref<12x16xf32, #tpu.memory_space<vmem>>, %arg6: memref<1x16xf32, #tpu.memory_space<vmem>>, %arg7: memref<32x32xf32, #tpu.memory_space<vmem>>, %arg8: memref<16x32xf32, #tpu.memory_space<vmem>>, %arg9: memref<1x32xf32, #tpu.memory_space<vmem>>, %arg10: memref<32x128xbf16, #tpu.memory_space<vmem>>, %arg11: memref<16x128xbf16, #tpu.memory_space<vmem>>, %arg12: memref<1x128xf32, #tpu.memory_space<vmem>>, %arg13: memref<8x128xf32, #tpu.memory_space<vmem>>, %arg14: memref<8x1xf32, #tpu.memory_space<vmem>>, %arg15: memref<8x32xf32, #tpu.memory_space<vmem>>, %arg16: memref<8x1xf32, #tpu.memory_space<vmem>>, %arg17: memref<8x1xf32, #tpu.memory_space<vmem>>) attributes {dimension_semantics = [#tpu.dimension_semantics<parallel>, #tpu.dimension_semantics<arbitrary>], iteration_bounds = array<i64: 1, 1>, scalar_prefetch = 0 : i64, scratch_operands = 3 : i64, tpu.core_type = #tpu.core_type<tc>, window_params = [{transform_indices = @transform_0, window_bounds = array<i64: 8, 32>}, {transform_indices = @transform_1, window_bounds = array<i64: 8, 12>}, {transform_indices = @transform_2, window_bounds = array<i64: 8, 16>}, {pipeline_mode = #tpu.pipeline_mode<synchronous>, transform_indices = @transform_3, window_bounds = array<i64: 12, 16>}, {pipeline_mode = #tpu.pipeline_mode<synchronous>, transform_indices = @transform_4, window_bounds = array<i64: 1, 16>}, {pipeline_mode = #tpu.pipeline_mode<synchronous>, transform_indices = @transform_5, window_bounds = array<i64: 32, 32>}, {pipeline_mode = #tpu.pipeline_mode<synchronous>, transform_indices = @transform_6, window_bounds = array<i64: 16, 32>}, {pipeline_mode = #tpu.pipeline_mode<synchronous>, transform_indices = @transform_7, window_bounds = array<i64: 1, 32>}, {transform_indices = @transform_8, window_bounds = array<i64: 32, 128>}, {transform_indices = @transform_9, window_bounds = array<i64: 16, 128>}, {transform_indices = @transform_10, window_bounds = array<i64: 1, 128>}, {transform_indices = @transform_11, window_bounds = array<i64: 8, 128>}, {transform_indices = @transform_12, window_bounds = array<i64: 8, 1>}]} {
    %c0_i32 = arith.constant 0 : i32
    %0 = arith.cmpi eq, %arg1, %c0_i32 : i32
    %1 = arith.extui %0 : i1 to i32
    %c0_i32_0 = arith.constant 0 : i32
    %2 = arith.cmpi ne, %1, %c0_i32_0 : i32
    scf.if %2 {
      %c0_25 = arith.constant 0 : index
      %c0_26 = arith.constant 0 : index
      %35 = vector.load %arg3[%c0_25, %c0_26] : memref<8x12xf32, #tpu.memory_space<vmem>>, vector<8x12xf32>
      %c0_27 = arith.constant 0 : index
      %c0_28 = arith.constant 0 : index
      %36 = vector.load %arg5[%c0_27, %c0_28] : memref<12x16xf32, #tpu.memory_space<vmem>>, vector<12x16xf32>
      %cst_29 = arith.constant dense<0.000000e+00> : vector<8x16xf32>
      %37 = tpu.matmul %35, %36, %cst_29 {dimension_numbers = #tpu.dot_dimension_numbers<[1], [0], [0], [1], [0, 0, 1, 1], [], []>} : vector<8x12xf32>, vector<12x16xf32>, vector<8x16xf32> -> vector<8x16xf32>
      %c0_30 = arith.constant 0 : index
      %c0_31 = arith.constant 0 : index
      %38 = vector.load %arg6[%c0_30, %c0_31] : memref<1x16xf32, #tpu.memory_space<vmem>>, vector<1x16xf32>
      %39 = vector.broadcast %38 : vector<1x16xf32> to vector<8x16xf32>
      %40 = arith.addf %37, %39 : vector<8x16xf32>
      %c0_32 = arith.constant 0 : index
      %c0_33 = arith.constant 0 : index
      %41 = vector.load %arg2[%c0_32, %c0_33] : memref<8x32xf32, #tpu.memory_space<vmem>>, vector<8x32xf32>
      %c0_34 = arith.constant 0 : index
      %c0_35 = arith.constant 0 : index
      %42 = vector.load %arg7[%c0_34, %c0_35] : memref<32x32xf32, #tpu.memory_space<vmem>>, vector<32x32xf32>
      %cst_36 = arith.constant dense<0.000000e+00> : vector<8x32xf32>
      %43 = tpu.matmul %41, %42, %cst_36 {dimension_numbers = #tpu.dot_dimension_numbers<[1], [0], [0], [1], [0, 0, 1, 1], [], []>} : vector<8x32xf32>, vector<32x32xf32>, vector<8x32xf32> -> vector<8x32xf32>
      %c0_37 = arith.constant 0 : index
      %c0_38 = arith.constant 0 : index
      %44 = vector.load %arg8[%c0_37, %c0_38] : memref<16x32xf32, #tpu.memory_space<vmem>>, vector<16x32xf32>
      %cst_39 = arith.constant dense<0.000000e+00> : vector<8x32xf32>
      %45 = tpu.matmul %40, %44, %cst_39 {dimension_numbers = #tpu.dot_dimension_numbers<[1], [0], [0], [1], [0, 0, 1, 1], [], []>} : vector<8x16xf32>, vector<16x32xf32>, vector<8x32xf32> -> vector<8x32xf32>
      %46 = arith.addf %43, %45 : vector<8x32xf32>
      %c0_40 = arith.constant 0 : index
      %c0_41 = arith.constant 0 : index
      %47 = vector.load %arg9[%c0_40, %c0_41] : memref<1x32xf32, #tpu.memory_space<vmem>>, vector<1x32xf32>
      %48 = vector.broadcast %47 : vector<1x32xf32> to vector<8x32xf32>
      %49 = arith.addf %46, %48 : vector<8x32xf32>
      %50 = math.tanh %49 : vector<8x32xf32>
      %c0_42 = arith.constant 0 : index
      %c0_43 = arith.constant 0 : index
      %51 = vector.load %arg15[%c0_42, %c0_43] : memref<8x32xf32, #tpu.memory_space<vmem>>, vector<8x32xf32>
      tpu.vector_store %arg15[%c0_42, %c0_43], %50 {strides = array<i32>} : memref<8x32xf32, #tpu.memory_space<vmem>>, vector<8x32xf32>,
      %cst_44 = arith.constant -1.000000e+30 : f32
      %52 = vector.broadcast %cst_44 : f32 to vector<8x1xf32>
      %c0_45 = arith.constant 0 : index
      %c0_46 = arith.constant 0 : index
      %53 = vector.load %arg16[%c0_45, %c0_46] : memref<8x1xf32, #tpu.memory_space<vmem>>, vector<8x1xf32>
      tpu.vector_store %arg16[%c0_45, %c0_46], %52 {strides = array<i32>} : memref<8x1xf32, #tpu.memory_space<vmem>>, vector<8x1xf32>,
      %cst_47 = arith.constant 0.000000e+00 : f32
      %54 = vector.broadcast %cst_47 : f32 to vector<8x1xf32>
      %c0_48 = arith.constant 0 : index
      %c0_49 = arith.constant 0 : index
      %55 = vector.load %arg17[%c0_48, %c0_49] : memref<8x1xf32, #tpu.memory_space<vmem>>, vector<8x1xf32>
      tpu.vector_store %arg17[%c0_48, %c0_49], %54 {strides = array<i32>} : memref<8x1xf32, #tpu.memory_space<vmem>>, vector<8x1xf32>,
    } else {
    }
    %c0 = arith.constant 0 : index
    %c0_1 = arith.constant 0 : index
    %3 = vector.load %arg15[%c0, %c0_1] : memref<8x32xf32, #tpu.memory_space<vmem>>, vector<8x32xf32>
    %4 = arith.truncf %3 : vector<8x32xf32> to vector<8x32xbf16>
    %c0_2 = arith.constant 0 : index
    %c0_3 = arith.constant 0 : index
    %5 = vector.load %arg10[%c0_2, %c0_3] : memref<32x128xbf16, #tpu.memory_space<vmem>>, vector<32x128xbf16>
    %cst = arith.constant dense<0.000000e+00> : vector<8x128xf32>
    %6 = tpu.matmul %4, %5, %cst {dimension_numbers = #tpu.dot_dimension_numbers<[1], [0], [0], [1], [0, 0, 1, 1], [], []>} : vector<8x32xbf16>, vector<32x128xbf16>, vector<8x128xf32> -> vector<8x128xf32>
    %c0_4 = arith.constant 0 : index
    %c0_5 = arith.constant 0 : index
    %7 = vector.load %arg4[%c0_4, %c0_5] : memref<8x16xf32, #tpu.memory_space<vmem>>, vector<8x16xf32>
    %8 = arith.truncf %7 : vector<8x16xf32> to vector<8x16xbf16>
    %c0_6 = arith.constant 0 : index
    %c0_7 = arith.constant 0 : index
    %9 = vector.load %arg11[%c0_6, %c0_7] : memref<16x128xbf16, #tpu.memory_space<vmem>>, vector<16x128xbf16>
    %cst_8 = arith.constant dense<0.000000e+00> : vector<8x128xf32>
    %10 = tpu.matmul %8, %9, %cst_8 {dimension_numbers = #tpu.dot_dimension_numbers<[1], [0], [0], [1], [0, 0, 1, 1], [], []>} : vector<8x16xbf16>, vector<16x128xbf16>, vector<8x128xf32> -> vector<8x128xf32>
    %11 = arith.addf %6, %10 : vector<8x128xf32>
    %c0_9 = arith.constant 0 : index
    %c0_10 = arith.constant 0 : index
    %12 = vector.load %arg12[%c0_9, %c0_10] : memref<1x128xf32, #tpu.memory_space<vmem>>, vector<1x128xf32>
    %13 = vector.broadcast %12 : vector<1x128xf32> to vector<8x128xf32>
    %14 = arith.addf %11, %13 : vector<8x128xf32>
    %c0_11 = arith.constant 0 : index
    %c0_12 = arith.constant 0 : index
    %15 = vector.load %arg13[%c0_11, %c0_12] : memref<8x128xf32, #tpu.memory_space<vmem>>, vector<8x128xf32>
    tpu.vector_store %arg13[%c0_11, %c0_12], %14 {strides = array<i32>} : memref<8x128xf32, #tpu.memory_space<vmem>>, vector<8x128xf32>,
    %c0_13 = arith.constant 0 : index
    %c0_14 = arith.constant 0 : index
    %16 = vector.load %arg16[%c0_13, %c0_14] : memref<8x1xf32, #tpu.memory_space<vmem>>, vector<8x1xf32>
    %cst_15 = arith.constant dense<0xFF800000> : vector<8xf32>
    %17 = vector.multi_reduction <maximumf>, %14, %cst_15 [1] : vector<8x128xf32> to vector<8xf32>
    %18 = vector.shape_cast %17 : vector<8xf32> to vector<8x1xf32>
    %19 = arith.maximumf %16, %18 : vector<8x1xf32>
    %c0_16 = arith.constant 0 : index
    %c0_17 = arith.constant 0 : index
    %20 = vector.load %arg17[%c0_16, %c0_17] : memref<8x1xf32, #tpu.memory_space<vmem>>, vector<8x1xf32>
    %21 = arith.subf %16, %19 : vector<8x1xf32>
    %22 = math.exp %21 : vector<8x1xf32>
    %23 = arith.mulf %20, %22 : vector<8x1xf32>
    %24 = vector.broadcast %19 : vector<8x1xf32> to vector<8x128xf32>
    %25 = arith.subf %14, %24 : vector<8x128xf32>
    %26 = math.exp %25 : vector<8x128xf32>
    %cst_18 = arith.constant dense<0.000000e+00> : vector<8xf32>
    %27 = vector.multi_reduction <add>, %26, %cst_18 [1] : vector<8x128xf32> to vector<8xf32>
    %28 = vector.shape_cast %27 : vector<8xf32> to vector<8x1xf32>
    %29 = arith.addf %23, %28 : vector<8x1xf32>
    %c0_19 = arith.constant 0 : index
    %c0_20 = arith.constant 0 : index
    %30 = vector.load %arg17[%c0_19, %c0_20] : memref<8x1xf32, #tpu.memory_space<vmem>>, vector<8x1xf32>
    tpu.vector_store %arg17[%c0_19, %c0_20], %29 {strides = array<i32>} : memref<8x1xf32, #tpu.memory_space<vmem>>, vector<8x1xf32>,
    %c0_21 = arith.constant 0 : index
    %c0_22 = arith.constant 0 : index
    %31 = vector.load %arg16[%c0_21, %c0_22] : memref<8x1xf32, #tpu.memory_space<vmem>>, vector<8x1xf32>
    tpu.vector_store %arg16[%c0_21, %c0_22], %19 {strides = array<i32>} : memref<8x1xf32, #tpu.memory_space<vmem>>, vector<8x1xf32>,
    %c0_i32_23 = arith.constant 0 : i32
    %32 = arith.cmpi eq, %arg1, %c0_i32_23 : i32
    %33 = arith.extui %32 : i1 to i32
    %c0_i32_24 = arith.constant 0 : i32
    %34 = arith.cmpi ne, %33, %c0_i32_24 : i32
    scf.if %34 {
      %c0_25 = arith.constant 0 : index
      %c0_26 = arith.constant 0 : index
      %35 = vector.load %arg16[%c0_25, %c0_26] : memref<8x1xf32, #tpu.memory_space<vmem>>, vector<8x1xf32>
      %c0_27 = arith.constant 0 : index
      %c0_28 = arith.constant 0 : index
      %36 = vector.load %arg17[%c0_27, %c0_28] : memref<8x1xf32, #tpu.memory_space<vmem>>, vector<8x1xf32>
      %37 = math.log %36 : vector<8x1xf32>
      %38 = arith.addf %35, %37 : vector<8x1xf32>
      %c0_29 = arith.constant 0 : index
      %c0_30 = arith.constant 0 : index
      %39 = vector.load %arg14[%c0_29, %c0_30] : memref<8x1xf32, #tpu.memory_space<vmem>>, vector<8x1xf32>
      tpu.vector_store %arg14[%c0_29, %c0_30], %38 {strides = array<i32>} : memref<8x1xf32, #tpu.memory_space<vmem>>, vector<8x1xf32>,
    } else {
    }
    return
  }
  func.func @transform_0(%arg0: i32, %arg1: i32) -> (i32, i32) {
    %c0_i32 = arith.constant 0 : i32
    %c0_i32_0 = arith.constant 0 : i32
    return %arg0, %c0_i32 : i32, i32
  }
  func.func @transform_1(%arg0: i32, %arg1: i32) -> (i32, i32) {
    %c0_i32 = arith.constant 0 : i32
    %c0_i32_0 = arith.constant 0 : i32
    return %arg0, %c0_i32 : i32, i32
  }
  func.func @transform_2(%arg0: i32, %arg1: i32) -> (i32, i32) {
    %c0_i32 = arith.constant 0 : i32
    %c0_i32_0 = arith.constant 0 : i32
    return %arg0, %c0_i32 : i32, i32
  }
  func.func @transform_3(%arg0: i32, %arg1: i32) -> (i32, i32) {
    %c0_i32 = arith.constant 0 : i32
    %c0_i32_0 = arith.constant 0 : i32
    %c0_i32_1 = arith.constant 0 : i32
    return %c0_i32, %c0_i32_0 : i32, i32
  }
  func.func @transform_4(%arg0: i32, %arg1: i32) -> (i32, i32) {
    %c0_i32 = arith.constant 0 : i32
    %c0_i32_0 = arith.constant 0 : i32
    %c0_i32_1 = arith.constant 0 : i32
    return %c0_i32, %c0_i32_0 : i32, i32
  }
  func.func @transform_5(%arg0: i32, %arg1: i32) -> (i32, i32) {
    %c0_i32 = arith.constant 0 : i32
    %c0_i32_0 = arith.constant 0 : i32
    %c0_i32_1 = arith.constant 0 : i32
    return %c0_i32, %c0_i32_0 : i32, i32
  }
  func.func @transform_6(%arg0: i32, %arg1: i32) -> (i32, i32) {
    %c0_i32 = arith.constant 0 : i32
    %c0_i32_0 = arith.constant 0 : i32
    %c0_i32_1 = arith.constant 0 : i32
    return %c0_i32, %c0_i32_0 : i32, i32
  }
  func.func @transform_7(%arg0: i32, %arg1: i32) -> (i32, i32) {
    %c0_i32 = arith.constant 0 : i32
    %c0_i32_0 = arith.constant 0 : i32
    %c0_i32_1 = arith.constant 0 : i32
    return %c0_i32, %c0_i32_0 : i32, i32
  }
  func.func @transform_8(%arg0: i32, %arg1: i32) -> (i32, i32) {
    %c0_i32 = arith.constant 0 : i32
    %c0_i32_0 = arith.constant 0 : i32
    return %c0_i32, %arg1 : i32, i32
  }
  func.func @transform_9(%arg0: i32, %arg1: i32) -> (i32, i32) {
    %c0_i32 = arith.constant 0 : i32
    %c0_i32_0 = arith.constant 0 : i32
    return %c0_i32, %arg1 : i32, i32
  }
  func.func @transform_10(%arg0: i32, %arg1: i32) -> (i32, i32) {
    %c0_i32 = arith.constant 0 : i32
    %c0_i32_0 = arith.constant 0 : i32
    return %c0_i32, %arg1 : i32, i32
  }
  func.func @transform_11(%arg0: i32, %arg1: i32) -> (i32, i32) {
    %c0_i32 = arith.constant 0 : i32
    return %arg0, %arg1 : i32, i32
  }
  func.func @transform_12(%arg0: i32, %arg1: i32) -> (i32, i32) {
    %c0_i32 = arith.constant 0 : i32
    %c0_i32_0 = arith.constant 0 : i32
    return %arg0, %c0_i32 : i32, i32
  }
}

</mosaic_0001>

<llo_original>
// kernel: _forward_core.1
$region0: #{_forward_core.1}
  #allocation0 [shape = 'u32[]', space=smem, size = 0x4, offset = 0x4, fixed_abs, tag = 'smem constant byte address 0x4 - core index']
  #allocation1 [shape = 'u32[144,128]{1,0:T(1,128)}', space=vmem, size = 0x12000, scoped, tag = 'internal scratch']
  #allocation2 [shape = 'f32[8,32]{1,0:T(8,128)}', space=vmem, size = 0x1000, scoped, tag = 'scratch operand']
  #allocation3 [shape = 'f32[8,1]{1,0:T(8,128)}', space=vmem, size = 0x1000, scoped, tag = 'scratch operand']
  #allocation4 [shape = 'f32[8,1]{1,0:T(8,128)}', space=vmem, size = 0x1000, scoped, tag = 'scratch operand']
  %s0 = inlined_call_operand.vmem [shape: f32[8,32], index: 0, kind: input, shape index: {}]
  %s1 = inlined_call_operand.vmem [shape: f32[8,12], index: 1, kind: input, shape index: {}]
  %s2 = inlined_call_operand.vmem [shape: f32[8,16], index: 2, kind: input, shape index: {}]
  %s3 = inlined_call_operand.vmem [shape: f32[12,16], index: 3, kind: input, shape index: {}]
  %s4 = inlined_call_operand.vmem [shape: f32[1,16], index: 4, kind: input, shape index: {}]
  %s5 = inlined_call_operand.vmem [shape: f32[32,32], index: 5, kind: input, shape index: {}]
  %s6 = inlined_call_operand.vmem [shape: f32[16,32], index: 6, kind: input, shape index: {}]
  %s7 = inlined_call_operand.vmem [shape: f32[1,32], index: 7, kind: input, shape index: {}]
  %s8 = inlined_call_operand.vmem [shape: bf16[32,128], index: 8, kind: input, shape index: {}]
  %s9 = inlined_call_operand.vmem [shape: bf16[16,128], index: 9, kind: input, shape index: {}]
  %s10 = inlined_call_operand.vmem [shape: f32[1,128], index: 10, kind: input, shape index: {}]
  %s11 = inlined_call_operand.vmem [shape: f32[8,128], index: 11, kind: output, shape index: {0}]
  %s12 = inlined_call_operand.vmem [shape: f32[8,1], index: 12, kind: output, shape index: {1}]
  %13 = xla_tuple %s11, %s12
  %s14 = sld [smem:[#allocation0]]
  $region70: #{_forward_core.1} parent=0
    _
  %s16 = ssub.s32 1, %s14
  %s17 = scalar_select 0, %s16, %s14
  // Predicated region
  $region2: #{_forward_core.1} parent=0 // pred_check
    _
  $region3: #{_forward_core.1} parent=0 // pred_check_branch
    %19 = sbr.rel (0) target = $region5
  $region4: #{_forward_core.1} parent=0 // pred_region
    _
  $region5: #{_forward_core.1} parent=0 // pred_fallthru
    _
  // Predicated region
  $region6: #{_forward_core.1} parent=0 // pred_check
    _
  $region7: #{_forward_core.1} parent=0 // pred_check_branch
    %21 = sbr.rel (0) target = $region9
  $region8: #{_forward_core.1} parent=0 // pred_region
    _
  $region9: #{_forward_core.1} parent=0 // pred_fallthru
    _
  // Predicated region
  $region10: #{_forward_core.1} parent=0 // pred_check
    _
  $region11: #{_forward_core.1} parent=0 // pred_check_branch
    %23 = sbr.rel (0) target = $region13
  $region12: #{_forward_core.1} parent=0 // pred_region
    _
  $region13: #{_forward_core.1} parent=0 // pred_fallthru
    _
  // Predicated region
  $region14: #{_forward_core.1} parent=0 // pred_check
    _
  $region15: #{_forward_core.1} parent=0 // pred_check_branch
    %25 = sbr.rel (0) target = $region17
  $region16: #{_forward_core.1} parent=0 // pred_region
    _
  $region17: #{_forward_core.1} parent=0 // pred_fallthru
    _
  // Predicated region
  $region18: #{_forward_core.1} parent=0 // pred_check
    _
  $region19: #{_forward_core.1} parent=0 // pred_check_branch
    %27 = sbr.rel (0) target = $region21
  $region20: #{_forward_core.1} parent=0 // pred_region
    _
  $region21: #{_forward_core.1} parent=0 // pred_fallthru
    _
  // Predicated region
  $region22: #{_forward_core.1} parent=0 // pred_check
    _
  $region23: #{_forward_core.1} parent=0 // pred_check_branch
    %29 = sbr.rel (0) target = $region25
  $region24: #{_forward_core.1} parent=0 // pred_region
    _
  $region25: #{_forward_core.1} parent=0 // pred_fallthru
    _
  // Predicated region
  $region26: #{_forward_core.1} parent=0 // pred_check
    _
  $region27: #{_forward_core.1} parent=0 // pred_check_branch
    %31 = sbr.rel (0) target = $region29
  $region28: #{_forward_core.1} parent=0 // pred_region
    _
  $region29: #{_forward_core.1} parent=0 // pred_fallthru
    _
  // Predicated region
  $region30: #{_forward_core.1} parent=0 // pred_check
    _
  $region31: #{_forward_core.1} parent=0 // pred_check_branch
    %33 = sbr.rel (0) target = $region33
  $region32: #{_forward_core.1} parent=0 // pred_region
    _
  $region33: #{_forward_core.1} parent=0 // pred_fallthru
    _
  // Predicated region
  $region34: #{_forward_core.1} parent=0 // pred_check
    _
  $region35: #{_forward_core.1} parent=0 // pred_check_branch
    %35 = sbr.rel (0) target = $region37
  $region36: #{_forward_core.1} parent=0 // pred_region
    _
  $region37: #{_forward_core.1} parent=0 // pred_fallthru
    _
  // Predicated region
  $region38: #{_forward_core.1} parent=0 // pred_check
    _
  $region39: #{_forward_core.1} parent=0 // pred_check_branch
    %37 = sbr.rel (0) target = $region41
  $region40: #{_forward_core.1} parent=0 // pred_region
    _
  $region41: #{_forward_core.1} parent=0 // pred_fallthru
    _
  // Predicated region
  $region42: #{_forward_core.1} parent=0 // pred_check
    _
  $region43: #{_forward_core.1} parent=0 // pred_check_branch
    %39 = sbr.rel (0) target = $region45
  $region44: #{_forward_core.1} parent=0 // pred_region
    _
  $region45: #{_forward_core.1} parent=0 // pred_fallthru
    _
  %p41 = scmp.eq.s32.totalorder 0, 0
  // Predicated region
  $region46: #{_forward_core.1} parent=0 // pred_check
    %p42 = pneg %p41
  $region47: #{_forward_core.1} parent=0 // pred_check_branch
    %44 = sbr.rel (%p42) target = $region49
  $region48: #{_forward_core.1} parent=0 // pred_region
    %v45 = vld [vmem:[%s1] sm:$0xff]
    %v46 = vld [vmem:[%s3] sm:$0xff]
    %v47 = vld [vmem:[%s3 + $0x8] sm:$0xf]
    %v48 = vld [vmem:[%s4] sm:$0x1]
    %v50 = vlaneseq
    %v51 = vshrl.u32 %v50, 7
    %v52 = vsub.s32 0, %v51
    %v53 = vrot.slane %v48, %v52
    %vm55 = vcmask 97280
    %v57 = vsel %vm55, %v45, 0
    %vm59 = vcmask 1043456
    %v61 = vsel %vm59, %v47, 0
    %63 = vmatprep.subr.mxu0 0.0
    %64 = vmatpush1.msra.mxu0 %v46
    %65 = vmatprep.subr.mxu0 0.0
    %66 = vmatpush1.msra.mxu0 %v61
    %67 = vmatprep.subr.mxu0 0.0
    %68 = vmatpush1.msra.mxu0 0.0
    %69 = vmatprep.subr.mxu0 0.0
    %70 = vmatpush1.msra.mxu0 0.0
    %71 = vmatprep.subr.mxu0 0.0
    %72 = vmatpush1.msra.mxu0 0.0
    %73 = vmatprep.subr.mxu0 0.0
    %74 = vmatpush1.msra.mxu0 0.0
    %75 = vmatprep.subr.mxu0 0.0
    %76 = vmatpush1.msra.mxu0 0.0
    %77 = vmatprep.subr.mxu0 0.0
    %78 = vmatpush1.msra.mxu0 0.0
    %79 = vmatprep.subr.mxu0 0.0
    %80 = vmatpush1.msra.mxu0 0.0
    %81 = vmatprep.subr.mxu0 0.0
    %82 = vmatpush1.msra.mxu0 0.0
    %83 = vmatprep.subr.mxu0 0.0
    %84 = vmatpush1.msra.mxu0 0.0
    %85 = vmatprep.subr.mxu0 0.0
    %86 = vmatpush1.msra.mxu0 0.0
    %87 = vmatprep.subr.mxu0 0.0
    %88 = vmatpush1.msra.mxu0 0.0
    %89 = vmatprep.subr.mxu0 0.0
    %90 = vmatpush1.msra.mxu0 0.0
    %91 = vmatprep.subr.mxu0 0.0
    %92 = vmatpush1.msra.mxu0 0.0
    %93 = vmatprep.subr.mxu0 0.0
    %94 = vmatpush1.msra.mxu0 0.0
    %95 = vmatprep.subr.mxu0 0.0
    %96 = vmatpush1.msra.mxu0 0.0
    %97 = vmatprep.subr.mxu0 0.0
    %98 = vmatpush1.msra.mxu0 0.0
    %99 = vmatprep.subr.mxu0 0.0
    %100 = vmatpush1.msra.mxu0 0.0
    %101 = vmatprep.subr.mxu0 0.0
    %102 = vmatpush1.msra.mxu0 0.0
    %103 = vmatprep.subr.mxu0 0.0
    %104 = vmatpush1.msra.mxu0 0.0
    %105 = vmatprep.subr.mxu0 0.0
    %106 = vmatpush1.msra.mxu0 0.0
    %107 = vmatprep.subr.mxu0 0.0
    %108 = vmatpush1.msra.mxu0 0.0
    %109 = vmatprep.subr.mxu0 0.0
    %110 = vmatpush1.msra.mxu0 0.0
    %111 = vmatprep.subr.mxu0 0.0
    %112 = vmatpush1.msra.mxu0 0.0
    %113 = vmatprep.subr.mxu0 0.0
    %114 = vmatpush1.msra.mxu0 0.0
    %115 = vmatprep.subr.mxu0 0.0
    %116 = vmatpush1.msra.mxu0 0.0
    %117 = vmatprep.subr.mxu0 0.0
    %118 = vmatpush1.msra.mxu0 0.0
    %119 = vmatprep.subr.mxu0 0.0
    %120 = vmatpush1.msra.mxu0 0.0
    %121 = vmatprep.subr.mxu0 0.0
    %122 = vmatpush1.msra.mxu0 0.0
    %123 = vmatprep.subr.mxu0 0.0
    %124 = vmatpush1.msra.mxu0 0.0
    %125 = vmatprep.subr.mxu0 0.0
    %126 = vmatpush1.msra.mxu0 0.0
    %127 = vmatprep.mubr.f32.mxu0 0.0
    %128 = vmatmul.mubr.f32.gmra.mrb[0].mxu0 %v57
    %v129 = vpop.f32.mrb[0].mxu0
    %v130 = vadd.f32 %v53, %v129
    %v131 = vpop.f32.mrb[0].mxu0
    %132 = vdwg.mxu0
    %v133 = vld [vmem:[%s0] sm:$0xff]
    %v134 = vld [vmem:[%s5] sm:$0xff]
    %v135 = vld [vmem:[%s5 + $0x8] sm:$0xff]
    %v136 = vld [vmem:[%s5 + $0x10] sm:$0xff]
    %v137 = vld [vmem:[%s5 + $0x18] sm:$0xff]
    %v138 = vld [vmem:[%s6] sm:$0xff]
    %v139 = vld [vmem:[%s6 + $0x8] sm:$0xff]
    %vm140 = vcmask 130048
    %v142 = vsel %vm140, %v130, 0
    %144 = vmatprep.subr.mxu0 0.0
    %145 = vmatpush1.msra.mxu0 %v138
    %146 = vmatprep.subr.mxu0 0.0
    %147 = vmatpush1.msra.mxu0 %v139
    %148 = vmatprep.subr.mxu0 0.0
    %149 = vmatpush1.msra.mxu0 0.0
    %150 = vmatprep.subr.mxu0 0.0
    %151 = vmatpush1.msra.mxu0 0.0
    %152 = vmatprep.subr.mxu0 0.0
    %153 = vmatpush1.msra.mxu0 0.0
    %154 = vmatprep.subr.mxu0 0.0
    %155 = vmatpush1.msra.mxu0 0.0
    %156 = vmatprep.subr.mxu0 0.0
    %157 = vmatpush1.msra.mxu0 0.0
    %158 = vmatprep.subr.mxu0 0.0
    %159 = vmatpush1.msra.mxu0 0.0
    %160 = vmatprep.subr.mxu0 0.0
    %161 = vmatpush1.msra.mxu0 0.0
    %162 = vmatprep.subr.mxu0 0.0
    %163 = vmatpush1.msra.mxu0 0.0
    %164 = vmatprep.subr.mxu0 0.0
    %165 = vmatpush1.msra.mxu0 0.0
    %166 = vmatprep.subr.mxu0 0.0
    %167 = vmatpush1.msra.mxu0 0.0
    %168 = vmatprep.subr.mxu0 0.0
    %169 = vmatpush1.msra.mxu0 0.0
    %170 = vmatprep.subr.mxu0 0.0
    %171 = vmatpush1.msra.mxu0 0.0
    %172 = vmatprep.subr.mxu0 0.0
    %173 = vmatpush1.msra.mxu0 0.0
    %174 = vmatprep.subr.mxu0 0.0
    %175 = vmatpush1.msra.mxu0 0.0
    %176 = vmatprep.subr.mxu0 0.0
    %177 = vmatpush1.msra.mxu0 0.0
    %178 = vmatprep.subr.mxu0 0.0
    %179 = vmatpush1.msra.mxu0 0.0
    %180 = vmatprep.subr.mxu0 0.0
    %181 = vmatpush1.msra.mxu0 0.0
    %182 = vmatprep.subr.mxu0 0.0
    %183 = vmatpush1.msra.mxu0 0.0
    %184 = vmatprep.subr.mxu0 0.0
    %185 = vmatpush1.msra.mxu0 0.0
    %186 = vmatprep.subr.mxu0 0.0
    %187 = vmatpush1.msra.mxu0 0.0
    %188 = vmatprep.subr.mxu0 0.0
    %189 = vmatpush1.msra.mxu0 0.0
    %190 = vmatprep.subr.mxu0 0.0
    %191 = vmatpush1.msra.mxu0 0.0
    %192 = vmatprep.subr.mxu0 0.0
    %193 = vmatpush1.msra.mxu0 0.0
    %194 = vmatprep.subr.mxu0 0.0
    %195 = vmatpush1.msra.mxu0 0.0
    %196 = vmatprep.subr.mxu0 0.0
    %197 = vmatpush1.msra.mxu0 0.0
    %198 = vmatprep.subr.mxu0 0.0
    %199 = vmatpush1.msra.mxu0 0.0
    %200 = vmatprep.subr.mxu0 0.0
    %201 = vmatpush1.msra.mxu0 0.0
    %202 = vmatprep.subr.mxu0 0.0
    %203 = vmatpush1.msra.mxu0 0.0
    %204 = vmatprep.subr.mxu0 0.0
    %205 = vmatpush1.msra.mxu0 0.0
    %206 = vmatprep.subr.mxu0 0.0
    %207 = vmatpush1.msra.mxu0 0.0
    %208 = vmatprep.mubr.f32.mxu0 0.0
    %209 = vmatmul.mubr.f32.gmra.mrb[0].mxu0 %v142
    %v210 = vpop.f32.mrb[0].mxu0
    %v211 = vadd.f32 0.0, %v210
    %v212 = vpop.f32.mrb[0].mxu0
    %213 = vdwg.mxu0
    %vm214 = vcmask 261120
    %v216 = vsel %vm214, %v133, 0
    %218 = vmatprep.subr.mxu0 0.0
    %219 = vmatpush1.msra.mxu0 %v134
    %220 = vmatprep.subr.mxu0 0.0
    %221 = vmatpush1.msra.mxu0 %v135
    %222 = vmatprep.subr.mxu0 0.0
    %223 = vmatpush1.msra.mxu0 %v136
    %224 = vmatprep.subr.mxu0 0.0
    %225 = vmatpush1.msra.mxu0 %v137
    %226 = vmatprep.subr.mxu0 0.0
    %227 = vmatpush1.msra.mxu0 0.0
    %228 = vmatprep.subr.mxu0 0.0
    %229 = vmatpush1.msra.mxu0 0.0
    %230 = vmatprep.subr.mxu0 0.0
    %231 = vmatpush1.msra.mxu0 0.0
    %232 = vmatprep.subr.mxu0 0.0
    %233 = vmatpush1.msra.mxu0 0.0
    %234 = vmatprep.subr.mxu0 0.0
    %235 = vmatpush1.msra.mxu0 0.0
    %236 = vmatprep.subr.mxu0 0.0
    %237 = vmatpush1.msra.mxu0 0.0
    %238 = vmatprep.subr.mxu0 0.0
    %239 = vmatpush1.msra.mxu0 0.0
    %240 = vmatprep.subr.mxu0 0.0
    %241 = vmatpush1.msra.mxu0 0.0
    %242 = vmatprep.subr.mxu0 0.0
    %243 = vmatpush1.msra.mxu0 0.0
    %244 = vmatprep.subr.mxu0 0.0
    %245 = vmatpush1.msra.mxu0 0.0
    %246 = vmatprep.subr.mxu0 0.0
    %247 = vmatpush1.msra.mxu0 0.0
    %248 = vmatprep.subr.mxu0 0.0
    %249 = vmatpush1.msra.mxu0 0.0
    %250 = vmatprep.subr.mxu0 0.0
    %251 = vmatpush1.msra.mxu0 0.0
    %252 = vmatprep.subr.mxu0 0.0
    %253 = vmatpush1.msra.mxu0 0.0
    %254 = vmatprep.subr.mxu0 0.0
    %255 = vmatpush1.msra.mxu0 0.0
    %256 = vmatprep.subr.mxu0 0.0
    %257 = vmatpush1.msra.mxu0 0.0
    %258 = vmatprep.subr.mxu0 0.0
    %259 = vmatpush1.msra.mxu0 0.0
    %260 = vmatprep.subr.mxu0 0.0
    %261 = vmatpush1.msra.mxu0 0.0
    %262 = vmatprep.subr.mxu0 0.0
    %263 = vmatpush1.msra.mxu0 0.0
    %264 = vmatprep.subr.mxu0 0.0
    %265 = vmatpush1.msra.mxu0 0.0
    %266 = vmatprep.subr.mxu0 0.0
    %267 = vmatpush1.msra.mxu0 0.0
    %268 = vmatprep.subr.mxu0 0.0
    %269 = vmatpush1.msra.mxu0 0.0
    %270 = vmatprep.subr.mxu0 0.0
    %271 = vmatpush1.msra.mxu0 0.0
    %272 = vmatprep.subr.mxu0 0.0
    %273 = vmatpush1.msra.mxu0 0.0
    %274 = vmatprep.subr.mxu0 0.0
    %275 = vmatpush1.msra.mxu0 0.0
    %276 = vmatprep.subr.mxu0 0.0
    %277 = vmatpush1.msra.mxu0 0.0
    %278 = vmatprep.subr.mxu0 0.0
    %279 = vmatpush1.msra.mxu0 0.0
    %280 = vmatprep.subr.mxu0 0.0
    %281 = vmatpush1.msra.mxu0 0.0
    %282 = vmatprep.mubr.f32.mxu0 0.0
    %283 = vmatmul.mubr.f32.gmra.mrb[0].mxu0 %v216
    %v284 = vpop.f32.mrb[0].mxu0
    %v285 = vadd.f32 %v211, %v284
    %v286 = vpop.f32.mrb[0].mxu0
    %287 = vdwg.mxu0
    %v288 = vld [vmem:[%s7] sm:$0x1]
    %v290 = vlaneseq
    %v291 = vshrl.u32 %v290, 7
    %v292 = vsub.s32 0, %v291
    %v293 = vrot.slane %v288, %v292
    %v295 = vadd.f32 %v285, %v293
    %v296 = vtanh.pop %v295
    %297 = vst.msk [vmem:[#allocation2] sm:$0xff] %vm214, %v296
    %vm298 = vcmask 7168
    %299 = vst.msk [vmem:[#allocation3] sm:$0xff] %vm298, -1e+30
    %300 = vst.msk [vmem:[#allocation4] sm:$0xff] %vm298, 0.0
  $region49: #{_forward_core.1} parent=0 // pred_fallthru
    _
  %v301 = vld [vmem:[#allocation2] sm:$0xff]
  %v302 = vpack.c.bf16 %v301, %v301
  %v303 = vld [vmem:[%s8] sm:$0xf]
  %v304 = vld [vmem:[%s8 + $0x4] sm:$0xf]
  %v305 = vld [vmem:[%s8 + $0x8] sm:$0xf]
  %v306 = vld [vmem:[%s8 + $0xc] sm:$0xf]
  %v307 = vld [vmem:[%s2] sm:$0xff]
  %v308 = vpack.c.bf16 %v307, %v307
  %v309 = vld [vmem:[%s9] sm:$0xf]
  %v310 = vld [vmem:[%s9 + $0x4] sm:$0xf]
  %v313 = vunpack.c.l.b16 %v309
  %v314 = vunpack.c.l.b16 %v310
  %v315 = vpack.c.b16 %v314, %v313
  %vm317 = vcmask 130048
  %v319 = vsel %vm317, %v308, 0
  %321 = vmatprep.subr.bf16.mxu0 0
  %322 = vmatpush1.bf16.msra.mxu0 %v315
  %323 = vmatprep.subr.bf16.mxu0 0
  %324 = vmatpush1.bf16.msra.mxu0 0
  %325 = vmatprep.subr.bf16.mxu0 0
  %326 = vmatpush1.bf16.msra.mxu0 0
  %327 = vmatprep.subr.bf16.mxu0 0
  %328 = vmatpush1.bf16.msra.mxu0 0
  %329 = vmatprep.subr.bf16.mxu0 0
  %330 = vmatpush1.bf16.msra.mxu0 0
  %331 = vmatprep.subr.bf16.mxu0 0
  %332 = vmatpush1.bf16.msra.mxu0 0
  %333 = vmatprep.subr.bf16.mxu0 0
  %334 = vmatpush1.bf16.msra.mxu0 0
  %335 = vmatprep.subr.bf16.mxu0 0
  %336 = vmatpush1.bf16.msra.mxu0 0
  %337 = vmatprep.subr.bf16.mxu0 0
  %338 = vmatpush1.bf16.msra.mxu0 0
  %339 = vmatprep.subr.bf16.mxu0 0
  %340 = vmatpush1.bf16.msra.mxu0 0
  %341 = vmatprep.subr.bf16.mxu0 0
  %342 = vmatpush1.bf16.msra.mxu0 0
  %343 = vmatprep.subr.bf16.mxu0 0
  %344 = vmatpush1.bf16.msra.mxu0 0
  %345 = vmatprep.subr.bf16.mxu0 0
  %346 = vmatpush1.bf16.msra.mxu0 0
  %347 = vmatprep.subr.bf16.mxu0 0
  %348 = vmatpush1.bf16.msra.mxu0 0
  %349 = vmatprep.subr.bf16.mxu0 0
  %350 = vmatpush1.bf16.msra.mxu0 0
  %351 = vmatprep.subr.bf16.mxu0 0
  %352 = vmatpush1.bf16.msra.mxu0 0
  %353 = vmatprep.mubr.bf16.mxu0 0
  %354 = vmatmul.mubr.bf16.gmra.mrb[0].mxu0 %v319
  %v355 = vpop.f32.mrb[0].mxu0
  %v356 = vadd.f32 0.0, %v355
  %v357 = vpop.f32.mrb[0].mxu0
  %v358 = vpop.f32.mrb[0].mxu0
  %v359 = vpop.f32.mrb[0].mxu0
  %360 = vdwg.mxu0
  %v365 = vunpack.c.l.b16 %v303
  %v366 = vunpack.c.l.b16 %v304
  %v367 = vunpack.c.l.b16 %v305
  %v368 = vunpack.c.l.b16 %v306
  %v369 = vpack.c.b16 %v366, %v365
  %v370 = vpack.c.b16 %v368, %v367
  %vm373 = vcmask 261120
  %v375 = vsel %vm373, %v302, 0
  %377 = vmatprep.subr.bf16.mxu0 0
  %378 = vmatpush1.bf16.msra.mxu0 %v369
  %379 = vmatprep.subr.bf16.mxu0 0
  %380 = vmatpush1.bf16.msra.mxu0 %v370
  %381 = vmatprep.subr.bf16.mxu0 0
  %382 = vmatpush1.bf16.msra.mxu0 0
  %383 = vmatprep.subr.bf16.mxu0 0
  %384 = vmatpush1.bf16.msra.mxu0 0
  %385 = vmatprep.subr.bf16.mxu0 0
  %386 = vmatpush1.bf16.msra.mxu0 0
  %387 = vmatprep.subr.bf16.mxu0 0
  %388 = vmatpush1.bf16.msra.mxu0 0
  %389 = vmatprep.subr.bf16.mxu0 0
  %390 = vmatpush1.bf16.msra.mxu0 0
  %391 = vmatprep.subr.bf16.mxu0 0
  %392 = vmatpush1.bf16.msra.mxu0 0
  %393 = vmatprep.subr.bf16.mxu0 0
  %394 = vmatpush1.bf16.msra.mxu0 0
  %395 = vmatprep.subr.bf16.mxu0 0
  %396 = vmatpush1.bf16.msra.mxu0 0
  %397 = vmatprep.subr.bf16.mxu0 0
  %398 = vmatpush1.bf16.msra.mxu0 0
  %399 = vmatprep.subr.bf16.mxu0 0
  %400 = vmatpush1.bf16.msra.mxu0 0
  %401 = vmatprep.subr.bf16.mxu0 0
  %402 = vmatpush1.bf16.msra.mxu0 0
  %403 = vmatprep.subr.bf16.mxu0 0
  %404 = vmatpush1.bf16.msra.mxu0 0
  %405 = vmatprep.subr.bf16.mxu0 0
  %406 = vmatpush1.bf16.msra.mxu0 0
  %407 = vmatprep.subr.bf16.mxu0 0
  %408 = vmatpush1.bf16.msra.mxu0 0
  %409 = vmatprep.mubr.bf16.mxu0 0
  %410 = vmatmul.mubr.bf16.gmra.mrb[0].mxu0 %v375
  %v411 = vpop.f32.mrb[0].mxu0
  %v412 = vadd.f32 %v356, %v411
  %v413 = vpop.f32.mrb[0].mxu0
  %v414 = vpop.f32.mrb[0].mxu0
  %v415 = vpop.f32.mrb[0].mxu0
  %416 = vdwg.mxu0
  %v417 = vld [vmem:[%s10] sm:$0x1]
  %v419 = vlaneseq
  %v420 = vshrl.u32 %v419, 7
  %v421 = vsub.s32 0, %v420
  %v422 = vrot.slane %v417, %v421
  %v424 = vadd.f32 %v412, %v422
  %425 = vst [vmem:[%s11] sm:$0xff] %v424
  %v426 = vld [vmem:[#allocation3] sm:$0xff]
  %427 = vmax.xlane.f32.xlu0 %v424
  %v428 = vpop.xlane.xlu0 %427
  %v429 = vmax.f32 %v426, %v428
  %v430 = vld [vmem:[#allocation4] sm:$0xff]
  %v431 = vsub.f32 %v426, %v429
  %v432 = vmul.f32 %v431, 1.442695
  %v433 = vpow.pop %v432
  %v434 = vmul.f32 %v430, %v433
  %436 = vset.pattern.permute.xlu0 0
  %437 = vperm.xlu0 %436, %v429
  %v438 = vpop.permute.xlu0 %437
  %v440 = vsub.f32 %v424, %v438
  %v441 = vmul.f32 %v440, 1.442695
  %v442 = vpow.pop %v441
  %443 = vadd.xlane.f32.xlu0 %v442
  %v444 = vpop.xlane.xlu0 %443
  %v445 = vadd.f32 %v434, %v444
  %vm446 = vcmask 7168
  %447 = vst.msk [vmem:[#allocation4] sm:$0xff] %vm446, %v445
  %448 = vst.msk [vmem:[#allocation3] sm:$0xff] %vm446, %v429
  // Predicated region
  $region50: #{_forward_core.1} parent=0 // pred_check
    %p449 = pneg %p41
  $region51: #{_forward_core.1} parent=0 // pred_check_branch
    %451 = sbr.rel (%p449) target = $region53
  $region52: #{_forward_core.1} parent=0 // pred_region
    %v452 = vld [vmem:[#allocation3] sm:$0xff]
    %v453 = vld [vmem:[#allocation4] sm:$0xff]
    %v454 = vlog2.pop %v453
    %v455 = vmul.f32 %v454, 0.6931472
    %v456 = vadd.f32 %v452, %v455
    %457 = vst.msk [vmem:[%s12] sm:$0xff] %vm446, %v456
  $region53: #{_forward_core.1} parent=0 // pred_fallthru
    _
  // Predicated region
  $region54: #{_forward_core.1} parent=0 // pred_check
    _
  $region55: #{_forward_core.1} parent=0 // pred_check_branch
    %459 = sbr.rel (0) target = $region57
  $region56: #{_forward_core.1} parent=0 // pred_region
    _
  $region57: #{_forward_core.1} parent=0 // pred_fallthru
    _
  // Predicated region
  $region58: #{_forward_core.1} parent=0 // pred_check
    _
  $region59: #{_forward_core.1} parent=0 // pred_check_branch
    %461 = sbr.rel (0) target = $region61
  $region60: #{_forward_core.1} parent=0 // pred_region
    _
  $region61: #{_forward_core.1} parent=0 // pred_fallthru
    _
  // Predicated region
  $region62: #{_forward_core.1} parent=0 // pred_check
    _
  $region63: #{_forward_core.1} parent=0 // pred_check_branch
    %463 = sbr.rel (0) target = $region65
  $region64: #{_forward_core.1} parent=0 // pred_region
    _
  $region65: #{_forward_core.1} parent=0 // pred_fallthru
    _
  // Predicated region
  $region66: #{_forward_core.1} parent=0 // pred_check
    _
  $region67: #{_forward_core.1} parent=0 // pred_check_branch
    %465 = sbr.rel (0) target = $region69
  $region68: #{_forward_core.1} parent=0 // pred_region
    _
  $region69: #{_forward_core.1} parent=0 // pred_fallthru
    _

</llo_original>
